<compile_context>
chip_gen: v7x
topology: tpu7x:2x2x1
jax: 0.10.0
libtpu: 0.0.40
codegen_flags: <defaults>
</compile_context>

<pallas_src>
import functools

import jax
import jax.numpy as jnp
from jax.experimental import pallas as pl
from jax.experimental.pallas import tpu as pltpu

NEG_SLOPE = 0.2          # GAT-paper LeakyReLU slope
MASK_NEG = -1e30         # "-inf" for masked (non-edge) logits


def _pick_row_tile(n):
    """Pick a query-row tile: full N if small, else a large divisor of N."""
    if n <= 512:
        return n
    for t in (512, 256, 128, 64, 32):
        if n % t == 0:
            return t
    return n  # TODO(synk): pad ragged N instead of falling back to one full block.


def _proj_kernel(h_ref, wf_ref, z_ref, ea_ref, *, hd_tot):
    """Fused projection for one row tile: [z_cat | el | er] = h @ W_fused."""
    # h_ref: (tq, din) bf16 ; wf_ref: (din, H*dout + 2H) bf16
    zf = jnp.dot(h_ref[...], wf_ref[...], preferred_element_type=jnp.float32)
    z_ref[...] = zf[:, :hd_tot].astype(z_ref.dtype)   # per-head features, cat layout (bf16)
    ea_ref[...] = zf[:, hd_tot:]                      # [el | er] logit halves (f32)


def _attn_kernel(adj_ref, el_ref, ert_ref, z_ref, o_ref, *, heads, dout):
    """Masked softmax attention + aggregation for one tile of query rows."""
    mask = adj_ref[...] != 0            # (tq, N)  int8 adjacency -> bool
    el = el_ref[...]                    # (tq, H)  f32
    ert = ert_ref[...]                  # (H, N)   f32 (er transposed)
    z = z_ref[...]                      # (N, H*dout) bf16, cat layout

    outs = []
    for hd in range(heads):             # static unroll over heads (small)
        e = el[:, hd:hd + 1] + ert[hd:hd + 1, :]              # (tq, N)
        e = jnp.where(e >= 0, e, NEG_SLOPE * e)               # LeakyReLU
        e = jnp.where(mask, e, MASK_NEG)                      # mask non-edges
        e = e - jnp.max(e, axis=-1, keepdims=True)
        p = jnp.exp(e)                                        # f32 softmax numerator
        denom = jnp.sum(p, axis=-1, keepdims=True)
        zh = z[:, hd * dout:(hd + 1) * dout]                  # (N, dout) bf16
        agg = jnp.dot(p.astype(jnp.bfloat16), zh,
                      preferred_element_type=jnp.float32)     # (tq, dout)
        # Normalize AFTER aggregation (O(tq*dout) instead of O(tq*N)); EUP recip.
        outs.append(agg * pl.reciprocal(denom, approx=True))
    # Single lane-dense store in torch.cat(dim=1) layout.
    o_ref[...] = jnp.concatenate(outs, axis=-1).astype(o_ref.dtype)


def multi_head_gat(h, adj, w, a_l, a_r, *, merge="cat"):
    """Pallas MultiHeadLayer forward.

    h   : (N, in_dim)            node features (f32)
    adj : (N, N)                 adjacency (nonzero = edge j -> i), self-loops incl.
    w   : (H, in_dim, out_dim)   per-head projection weights
    a_l : (H, 1, out_dim)        per-head attention vector (target/'left' half)
    a_r : (H, 1, out_dim)        per-head attention vector (neighbour/'right' half)
    """
    N, din = h.shape
    H, _, dout = w.shape
    hd_tot = H * dout
    c_tot = hd_tot + 2 * H
    tq = _pick_row_tile(N)
    n_tiles = N // tq

    # Fused projection weights: [W_cat | W a_l^T | W a_r^T]  -> (din, H*dout + 2H).
    w_cat = jnp.transpose(w, (1, 0, 2)).reshape(din, hd_tot)
    wa_l = jnp.einsum("hio,ho->ih", w, a_l[:, 0, :])          # (din, H)
    wa_r = jnp.einsum("hio,ho->ih", w, a_r[:, 0, :])          # (din, H)
    w_fused = jnp.concatenate([w_cat, wa_l, wa_r], axis=1).astype(jnp.bfloat16)

    h_bf = h.astype(jnp.bfloat16)
    adj_i8 = (adj != 0).astype(jnp.int8)

    # ---- Kernel 1: one wide projection matmul (all heads + attention vectors). ----
    z_all, ea = pl.pallas_call(
        functools.partial(_proj_kernel, hd_tot=hd_tot),
        out_shape=(jax.ShapeDtypeStruct((N, hd_tot), jnp.bfloat16),
                   jax.ShapeDtypeStruct((N, 2 * H), jnp.float32)),
        grid_spec=pltpu.PrefetchScalarGridSpec(
            num_scalar_prefetch=0,
            grid=(n_tiles,),
            in_specs=[
                pl.BlockSpec((tq, din), lambda i: (i, 0)),     # h rows (bf16)
                pl.BlockSpec((din, c_tot), lambda i: (0, 0)),  # fused W (const block)
            ],
            out_specs=[
                pl.BlockSpec((tq, hd_tot), lambda i: (i, 0)),
                pl.BlockSpec((tq, 2 * H), lambda i: (i, 0)),
            ]),
        compiler_params=pltpu.CompilerParams(
            dimension_semantics=("parallel",)),
    )(h_bf, w_fused)

    el = ea[:, :H]          # (N, H)  a_l . z_i
    ert = ea[:, H:].T       # (H, N)  a_r . z_j  (tiny transpose, lanes = nodes)

    # ---- Kernel 2: row-tiled masked softmax + aggregation, cat-layout output. ----
    # NOTE: constant-index blocks (ert, z) are not re-DMA'd across grid steps;
    # VMEM footprint per step is bounded by the tq x N adjacency slab (int8).
    out = pl.pallas_call(
        functools.partial(_attn_kernel, heads=H, dout=dout),
        out_shape=jax.ShapeDtypeStruct((N, hd_tot), jnp.float32),
        grid_spec=pltpu.PrefetchScalarGridSpec(
            num_scalar_prefetch=0,
            grid=(n_tiles,),
            in_specs=[
                pl.BlockSpec((tq, N), lambda i: (i, 0)),        # adjacency rows (int8)
                pl.BlockSpec((tq, H), lambda i: (i, 0)),        # el rows
                pl.BlockSpec((H, N), lambda i: (0, 0)),         # er^T (const block)
                pl.BlockSpec((N, hd_tot), lambda i: (0, 0)),    # z_all (const block)
            ],
            out_specs=pl.BlockSpec((tq, hd_tot), lambda i: (i, 0)),
        ),
        compiler_params=pltpu.CompilerParams(
            dimension_semantics=("parallel",)),
    )(adj_i8, el, ert, z_all)

    if merge == "cat":
        return out                        # (N, H*out_dim), already cat layout
    # Literal module semantics for the non-'cat' branch: torch.mean(torch.stack(...))
    # reduces over every element -> scalar (same element set as the cat output).
    return jnp.mean(out)


# ----------------------------- references -----------------------------------

def _reference_f32(h, adj, w, a_l, a_r):
    """Pure-f32 per-head reference (module semantics)."""
    outs = []
    for hd in range(w.shape[0]):
        z = h @ w[hd]
        e = z @ a_l[hd].T + a_r[hd] @ z.T
        e = jnp.where(e >= 0, e, NEG_SLOPE * e)
        e = jnp.where(adj > 0, e, MASK_NEG)
        alpha = jax.nn.softmax(e, axis=-1)
        outs.append(alpha @ z)
    return jnp.concatenate(outs, axis=1)


def _reference_bf16_matched(h, adj, w, a_l, a_r):
    """Reference mirroring the kernel's bf16 MXU operand rounding (exact divide)."""
    N, din = h.shape
    H, _, dout = w.shape
    hd_tot = H * dout
    w_cat = jnp.transpose(w, (1, 0, 2)).reshape(din, hd_tot)
    wa_l = jnp.einsum("hio,ho->ih", w, a_l[:, 0, :])
    wa_r = jnp.einsum("hio,ho->ih", w, a_r[:, 0, :])
    w_fused = jnp.concatenate([w_cat, wa_l, wa_r], axis=1).astype(jnp.bfloat16)
    hf = h.astype(jnp.bfloat16).astype(jnp.float32)
    zf = hf @ w_fused.astype(jnp.float32)
    z = zf[:, :hd_tot].astype(jnp.bfloat16).astype(jnp.float32)
    el, er = zf[:, hd_tot:hd_tot + H], zf[:, hd_tot + H:]
    outs = []
    for hd in range(H):
        e = el[:, hd:hd + 1] + er[:, hd][None, :]
        e = jnp.where(e >= 0, e, NEG_SLOPE * e)
        e = jnp.where(adj > 0, e, MASK_NEG)
        e = e - jnp.max(e, axis=-1, keepdims=True)
        p = jnp.exp(e)
        denom = jnp.sum(p, axis=-1, keepdims=True)
        pb = p.astype(jnp.bfloat16).astype(jnp.float32)
        outs.append((pb @ z[:, hd * dout:(hd + 1) * dout]) / denom)
    return jnp.concatenate(outs, axis=1)


if __name__ == "__main__":
    # Small deterministic problem: 8 nodes, in_dim=32, out_dim=16, 4 heads.
    N, IN_DIM, OUT_DIM, HEADS = 8, 32, 16, 4
    key = jax.random.PRNGKey(0)
    k_h, k_adj, k_w, k_al, k_ar = jax.random.split(key, 5)

    h = jax.random.normal(k_h, (N, IN_DIM), dtype=jnp.float32)

    # Random adjacency with self loops.
    adj = (jax.random.uniform(k_adj, (N, N)) > 0.5).astype(jnp.float32)
    adj = jnp.maximum(adj, jnp.eye(N, dtype=jnp.float32))

    w_scale = (2.0 / (IN_DIM + OUT_DIM)) ** 0.5
    a_scale = (2.0 / (OUT_DIM + 1)) ** 0.5
    w = jax.random.normal(k_w, (HEADS, IN_DIM, OUT_DIM), dtype=jnp.float32) * w_scale
    a_l = jax.random.normal(k_al, (HEADS, 1, OUT_DIM), dtype=jnp.float32) * a_scale
    a_r = jax.random.normal(k_ar, (HEADS, 1, OUT_DIM), dtype=jnp.float32) * a_scale

    out = multi_head_gat(h, adj, w, a_l, a_r, merge="cat")
    out = jax.block_until_ready(out)
    assert out.shape == (N, HEADS * OUT_DIM), out.shape

    # (a) Structural check vs pure-f32 module semantics: tolerance is set by the
    #     bf16 MXU operands recommended in the perf review.
    ref32 = _reference_f32(h, adj, w, a_l, a_r)
    assert jnp.allclose(out, ref32, atol=1e-1, rtol=1e-1), (
        "f32-ref mismatch, max abs diff = %f" % float(jnp.max(jnp.abs(out - ref32))))
    # (b) Tight check vs a reference that mirrors the kernel's bf16 rounding
    #     (only remaining deltas: approx reciprocal + accumulation order).
    refbf = _reference_bf16_matched(h, adj, w, a_l, a_r)
    assert jnp.allclose(out, refbf, atol=1e-2, rtol=1e-2), (
        "bf16-matched-ref mismatch, max abs diff = %f" % float(jnp.max(jnp.abs(out - refbf))))

    print("KERNEL_OK")
</pallas_src>

<mosaic_0001>
module attributes {stable_mosaic.version = 11 : i64} {
  func.func @_proj_kernel(%arg0: i32, %arg1: memref<8x32xbf16, #tpu.memory_space<vmem>>, %arg2: memref<32x72xbf16, #tpu.memory_space<vmem>>, %arg3: memref<8x64xbf16, #tpu.memory_space<vmem>>, %arg4: memref<8x8xf32, #tpu.memory_space<vmem>>) attributes {dimension_semantics = [#tpu.dimension_semantics<parallel>], iteration_bounds = array<i64: 1>, scalar_prefetch = 0 : i64, scratch_operands = 0 : i64, tpu.core_type = #tpu.core_type<tc>, window_params = [{transform_indices = @transform_0, window_bounds = array<i64: 8, 32>}, {pipeline_mode = #tpu.pipeline_mode<synchronous>, transform_indices = @transform_1, window_bounds = array<i64: 32, 72>}, {transform_indices = @transform_2, window_bounds = array<i64: 8, 64>}, {transform_indices = @transform_3, window_bounds = array<i64: 8, 8>}]} {
    %c0 = arith.constant 0 : index
    %c0_0 = arith.constant 0 : index
    %0 = vector.load %arg1[%c0, %c0_0] : memref<8x32xbf16, #tpu.memory_space<vmem>>, vector<8x32xbf16>
    %c0_1 = arith.constant 0 : index
    %c0_2 = arith.constant 0 : index
    %1 = vector.load %arg2[%c0_1, %c0_2] : memref<32x72xbf16, #tpu.memory_space<vmem>>, vector<32x72xbf16>
    %cst = arith.constant dense<0.000000e+00> : vector<8x72xf32>
    %2 = tpu.matmul %0, %1, %cst {dimension_numbers = #tpu.dot_dimension_numbers<[1], [0], [0], [1], [0, 0, 1, 1], [], []>} : vector<8x32xbf16>, vector<32x72xbf16>, vector<8x72xf32> -> vector<8x72xf32>
    %3 = vector.extract_strided_slice %2 {offsets = [0, 0], sizes = [8, 64], strides = [1, 1]} : vector<8x72xf32> to vector<8x64xf32>
    %4 = arith.truncf %3 : vector<8x64xf32> to vector<8x64xbf16>
    %c0_3 = arith.constant 0 : index
    %c0_4 = arith.constant 0 : index
    %5 = vector.load %arg3[%c0_3, %c0_4] : memref<8x64xbf16, #tpu.memory_space<vmem>>, vector<8x64xbf16>
    tpu.vector_store %arg3[%c0_3, %c0_4], %4 {strides = array<i32>} : memref<8x64xbf16, #tpu.memory_space<vmem>>, vector<8x64xbf16>,
    %6 = vector.extract_strided_slice %2 {offsets = [0, 64], sizes = [8, 8], strides = [1, 1]} : vector<8x72xf32> to vector<8x8xf32>
    %c0_5 = arith.constant 0 : index
    %c0_6 = arith.constant 0 : index
    %7 = vector.load %arg4[%c0_5, %c0_6] : memref<8x8xf32, #tpu.memory_space<vmem>>, vector<8x8xf32>
    tpu.vector_store %arg4[%c0_5, %c0_6], %6 {strides = array<i32>} : memref<8x8xf32, #tpu.memory_space<vmem>>, vector<8x8xf32>,
    return
  }
  func.func @transform_0(%arg0: i32) -> (i32, i32) {
    %c0_i32 = arith.constant 0 : i32
    %c0_i32_0 = arith.constant 0 : i32
    return %arg0, %c0_i32 : i32, i32
  }
  func.func @transform_1(%arg0: i32) -> (i32, i32) {
    %c0_i32 = arith.constant 0 : i32
    %c0_i32_0 = arith.constant 0 : i32
    %c0_i32_1 = arith.constant 0 : i32
    return %c0_i32, %c0_i32_0 : i32, i32
  }
  func.func @transform_2(%arg0: i32) -> (i32, i32) {
    %c0_i32 = arith.constant 0 : i32
    %c0_i32_0 = arith.constant 0 : i32
    return %arg0, %c0_i32 : i32, i32
  }
  func.func @transform_3(%arg0: i32) -> (i32, i32) {
    %c0_i32 = arith.constant 0 : i32
    %c0_i32_0 = arith.constant 0 : i32
    return %arg0, %c0_i32 : i32, i32
  }
}

</mosaic_0001>

<llo_original>
// kernel: tpu_custom_call.1
$region0: #{tpu_custom_call.1}
  #allocation0 [shape = 'u32[]', space=smem, size = 0x4, offset = 0x4, fixed_abs, tag = 'smem constant byte address 0x4 - core index']
  #allocation1 [shape = 'u32[144,128]{1,0:T(1,128)}', space=vmem, size = 0x12000, scoped, tag = 'internal scratch']
  %s0 = inlined_call_operand.hbm [shape: bf16[8,32], index: 0, kind: input, shape index: {}]
  %s1 = inlined_call_operand.hbm [shape: bf16[32,72], index: 1, kind: input, shape index: {}]
  %s2 = inlined_call_operand.hbm [shape: bf16[8,64], index: 2, kind: output, shape index: {0}]
  %s3 = inlined_call_operand.hbm [shape: f32[8,8], index: 3, kind: output, shape index: {1}]
  %4 = xla_tuple %s2, %s3
  %s5 = sld [smem:[#allocation0]]
  $region34: #{tpu_custom_call.1} parent=0
    _
  %s7 = ssub.s32 1, %s5
  %s8 = scalar_select 0, %s7, %s5
  $region1: #{tpu_custom_call.1} parent=0
    #allocation2 [shape = 'u8[2048]{0}', space=vmem, size = 0x800, scoped, tag = 'input window, operand 0, single buffered']
    #allocation3 [shape = 's32[1]{0}', space=sflag, size = 0x4, scoped, tag = 'scoped memory for tpu_custom_call.1']
    #allocation4 [shape = 's32[1]{0}', space=sflag, size = 0x4, scoped, tag = 'scoped memory for tpu_custom_call.1']
    #allocation5 [shape = 'u8[8192]{0}', space=vmem, size = 0x2000, scoped, tag = 'input window, operand 1, single buffered']
    #allocation6 [shape = 's32[1]{0}', space=sflag, size = 0x4, scoped, tag = 'scoped memory for tpu_custom_call.1']
    #allocation7 [shape = 'u8[2048]{0}', space=vmem, size = 0x800, scoped, tag = 'output window, operand 0, single buffered']
    #allocation8 [shape = 'u8[4096]{0}', space=vmem, size = 0x1000, scoped, tag = 'output window, operand 1, single buffered']
    #allocation9 [shape = 's32[1]{0}', space=sflag, size = 0x4, scoped, tag = 'scoped memory for tpu_custom_call.1']
    %9 = vsyncpa [#allocation3], 0
    %10 = vsyncpa [#allocation6], 0
    %11 = vsyncpa [#allocation4], 0
    %12 = vsyncpa [#allocation9], 0
    // Predicated region
    $region2: #{tpu_custom_call.1} parent=1 // pred_check
      _
    $region3: #{tpu_custom_call.1} parent=1 // pred_check_branch
      %14 = sbr.rel (0) target = $region5
    $region4: #{tpu_custom_call.1} parent=1 // pred_region
      %s16 = ssub.s32 64, 64
      %17 = vsyncadd [#allocation3], %s16
      %s19 = sshll.u32 [#allocation2], 4
      %s20 = int_to_ptr.vmem [resolvable:$true] %s19
      %22 = dma.hbm_to_vmem [thread:$0]  %s0, 64, %s20, [#allocation3]
    $region5: #{tpu_custom_call.1} parent=1 // pred_fallthru
      _
    // Predicated region
    $region6: #{tpu_custom_call.1} parent=1 // pred_check
      _
    $region7: #{tpu_custom_call.1} parent=1 // pred_check_branch
      %24 = sbr.rel (0) target = $region9
    $region8: #{tpu_custom_call.1} parent=1 // pred_region
      %s26 = ssub.s32 256, 256
      %27 = vsyncadd [#allocation6], %s26
      %s28 = sshll.u32 [#allocation5], 4
      %s29 = int_to_ptr.vmem [resolvable:$true] %s28
      %34 = dma.hbm_to_vmem [thread:$0]  %s1, 256, %s29, [#allocation6], 64, 64, 4
    $region9: #{tpu_custom_call.1} parent=1 // pred_fallthru
      _
    // Predicated region
    $region10: #{tpu_custom_call.1} parent=1 // pred_check
      _
    $region11: #{tpu_custom_call.1} parent=1 // pred_check_branch
      %36 = sbr.rel (0) target = $region13
    $region12: #{tpu_custom_call.1} parent=1 // pred_region
      %37 = dma.done [#allocation3], 64
    $region13: #{tpu_custom_call.1} parent=1 // pred_fallthru
      _
    // Predicated region
    $region14: #{tpu_custom_call.1} parent=1 // pred_check
      _
    $region15: #{tpu_custom_call.1} parent=1 // pred_check_branch
      %39 = sbr.rel (0) target = $region17
    $region16: #{tpu_custom_call.1} parent=1 // pred_region
      %40 = dma.done [#allocation6], 256
    $region17: #{tpu_custom_call.1} parent=1 // pred_fallthru
      _
    %v42 = vld [vmem:[#allocation2] sm:$0xf]
    %v43 = vld [vmem:[#allocation5] sm:$0xf]
    %v44 = vld [vmem:[#allocation5 + $0x4] sm:$0xf]
    %v45 = vld [vmem:[#allocation5 + $0x8] sm:$0xf]
    %v46 = vld [vmem:[#allocation5 + $0xc] sm:$0xf]
    %v51 = vunpack.c.l.b16 %v43
    %v52 = vunpack.c.l.b16 %v44
    %v53 = vunpack.c.l.b16 %v45
    %v54 = vunpack.c.l.b16 %v46
    %v55 = vpack.c.b16 %v52, %v51
    %v56 = vpack.c.b16 %v54, %v53
    %vm59 = vcmask 261120
    %v61 = vsel %vm59, %v42, 0
    %63 = vmatprep.subr.bf16.mxu0 0
    %64 = vmatpush1.bf16.msra.mxu0 %v55
    %65 = vmatprep.subr.bf16.mxu0 0
    %66 = vmatpush1.bf16.msra.mxu0 %v56
    %67 = vmatprep.subr.bf16.mxu0 0
    %68 = vmatpush1.bf16.msra.mxu0 0
    %69 = vmatprep.subr.bf16.mxu0 0
    %70 = vmatpush1.bf16.msra.mxu0 0
    %71 = vmatprep.subr.bf16.mxu0 0
    %72 = vmatpush1.bf16.msra.mxu0 0
    %73 = vmatprep.subr.bf16.mxu0 0
    %74 = vmatpush1.bf16.msra.mxu0 0
    %75 = vmatprep.subr.bf16.mxu0 0
    %76 = vmatpush1.bf16.msra.mxu0 0
    %77 = vmatprep.subr.bf16.mxu0 0
    %78 = vmatpush1.bf16.msra.mxu0 0
    %79 = vmatprep.subr.bf16.mxu0 0
    %80 = vmatpush1.bf16.msra.mxu0 0
    %81 = vmatprep.subr.bf16.mxu0 0
    %82 = vmatpush1.bf16.msra.mxu0 0
    %83 = vmatprep.subr.bf16.mxu0 0
    %84 = vmatpush1.bf16.msra.mxu0 0
    %85 = vmatprep.subr.bf16.mxu0 0
    %86 = vmatpush1.bf16.msra.mxu0 0
    %87 = vmatprep.subr.bf16.mxu0 0
    %88 = vmatpush1.bf16.msra.mxu0 0
    %89 = vmatprep.subr.bf16.mxu0 0
    %90 = vmatpush1.bf16.msra.mxu0 0
    %91 = vmatprep.subr.bf16.mxu0 0
    %92 = vmatpush1.bf16.msra.mxu0 0
    %93 = vmatprep.subr.bf16.mxu0 0
    %94 = vmatpush1.bf16.msra.mxu0 0
    %95 = vmatprep.mubr.bf16.mxu0 0
    %96 = vmatmul.mubr.bf16.gmra.mrb[0].mxu0 %v61
    %v97 = vpop.f32.mrb[0].mxu0
    %v98 = vadd.f32 0.0, %v97
    %v99 = vpop.f32.mrb[0].mxu0
    %v100 = vpop.f32.mrb[0].mxu0
    %v101 = vpop.f32.mrb[0].mxu0
    %102 = vdwg.mxu0
    %v103 = vpack.c.bf16 %v98, %v98
    %vm104 = vcmask 519168
    %105 = vst.msk [vmem:[#allocation7] sm:$0xf] %vm104, %v103
    %107 = vrot.lane.b32.xlu0 %v98, 64
    %v108 = vpop.permute.xlu0 %107
    %vm110 = vcmask 64512
    %111 = vst.msk [vmem:[#allocation8] sm:$0xff] %vm110, %v108
    // Predicated region
    $region18: #{tpu_custom_call.1} parent=1 // pred_check
      _
    $region19: #{tpu_custom_call.1} parent=1 // pred_check_branch
      %113 = sbr.rel (0) target = $region21
    $region20: #{tpu_custom_call.1} parent=1 // pred_region
      %s115 = ssub.s32 64, 64
      %116 = vsyncadd [#allocation4], %s115
      %s118 = sshll.u32 [#allocation7], 4
      %s119 = int_to_ptr.vmem [resolvable:$true] %s118
      %121 = dma.vmem_to_hbm [thread:$0]  %s119, 64, %s2, [#allocation4]
    $region21: #{tpu_custom_call.1} parent=1 // pred_fallthru
      _
    // Predicated region
    $region22: #{tpu_custom_call.1} parent=1 // pred_check
      _
    $region23: #{tpu_custom_call.1} parent=1 // pred_check_branch
      %123 = sbr.rel (0) target = $region25
    $region24: #{tpu_custom_call.1} parent=1 // pred_region
      %s125 = ssub.s32 128, 128
      %126 = vsyncadd [#allocation9], %s125
      %s128 = sshll.u32 [#allocation8], 4
      %s129 = int_to_ptr.vmem [resolvable:$true] %s128
      %131 = dma.vmem_to_hbm [thread:$0]  %s129, 128, %s3, [#allocation9]
    $region25: #{tpu_custom_call.1} parent=1 // pred_fallthru
      _
    // Predicated region
    $region26: #{tpu_custom_call.1} parent=1 // pred_check
      _
    $region27: #{tpu_custom_call.1} parent=1 // pred_check_branch
      %133 = sbr.rel (0) target = $region29
    $region28: #{tpu_custom_call.1} parent=1 // pred_region
      %134 = dma.done [#allocation4], 64
    $region29: #{tpu_custom_call.1} parent=1 // pred_fallthru
      _
    // Predicated region
    $region30: #{tpu_custom_call.1} parent=1 // pred_check
      _
    $region31: #{tpu_custom_call.1} parent=1 // pred_check_branch
      %136 = sbr.rel (0) target = $region33
    $region32: #{tpu_custom_call.1} parent=1 // pred_region
      %137 = dma.done [#allocation9], 128
    $region33: #{tpu_custom_call.1} parent=1 // pred_fallthru
      _
    %138 = vsyncpa [#allocation3], 1
    %139 = vsyncpa [#allocation6], 1
    %140 = vsyncpa [#allocation4], 1
    %141 = vsyncpa [#allocation9], 1

</llo_original>
